<compile_context>
chip_gen: v7x
topology: tpu7x:2x2x1
jax: 0.10.0
libtpu: 0.0.40
codegen_flags: <defaults>
</compile_context>

<pallas_src>
import functools

import jax
import jax.numpy as jnp
import numpy as np
from jax.experimental import pallas as pl
from jax.experimental.pallas import tpu as pltpu

_MAX_TK = 4096   # max contraction tile (rows of the basis)
_MAX_TN = 512    # max output-column tile (lane-dense, MXU friendly)
_LANES = 128
_SUBLANES = 8    # pad the two folded signal rows up to one sublane group


def _round_up(a, m):
    return (a + m - 1) // m * m


def _cdiv(a, m):
    return (a + m - 1) // m


def dft_rfft_kernel(x_ref, bT_ref, out_ref):
    """One (8, tk) @ (tk, tn) MXU step, accumulated over the K grid axis.

    x_ref  : (num_k, 8, tk) f32  folded signal (row 0 = even fold -> cos,
                                 row 1 = odd fold -> -sin), resident for the
                                 whole grid (constant index map).
    bT_ref : (tk, tn)       f32  contiguous fused [cos | -sin] basis tile.
    out_ref: (8, tn)        f32  lane-dense output tile, resident across K.
    """
    k = pl.program_id(1)

    @pl.when(k == 0)
    def _():
        out_ref[...] = jnp.zeros_like(out_ref)

    out_ref[...] += jnp.dot(
        x_ref[k], bT_ref[...], preferred_element_type=jnp.float32
    )


@functools.lru_cache(maxsize=None)
def _rfft_folded_basis(N: int):
    """Folded, padded, pre-blocked rfft basis.

    Returns (basis, meta) with basis of shape (num_j, K_pad, tn) f32 where
    column c = jb*tn + t of the fused matrix is
      columns [0, n)               ->  cos(2*pi*c*j/N)   (real part)
      columns [n_half, n_half + n) -> -sin(2*pi*c*j/N)   (imag part)
    and j is the *folded* time index (0 <= j <= N//2).
    """
    n = N // 2 + 1
    k_half = n                               # folded contraction length

    # Padded extents and tile sizes (tiles capped at the padded extents,
    # extents balanced across tiles so there is no tile-size over-padding).
    k_128 = _round_up(k_half, _LANES)
    num_k = _cdiv(k_128, _MAX_TK)
    tk = _round_up(_cdiv(k_128, num_k), _LANES)
    k_pad = tk * num_k

    n_half = _round_up(n, _LANES)
    cols = 2 * n_half
    num_j = _cdiv(cols, _MAX_TN)
    tn = _round_up(_cdiv(cols, num_j), _LANES)
    cols_pad = tn * num_j

    # Integer phase (c*j) mod N keeps the angle exact for large N.
    j = np.arange(k_half, dtype=np.int64)[:, None]   # folded time index
    c = np.arange(n, dtype=np.int64)[None, :]        # output frequency index
    ang = (2.0 * np.pi / N) * ((j * c) % N).astype(np.float64)

    B = np.zeros((k_pad, cols_pad), dtype=np.float32)
    B[:k_half, :n] = np.cos(ang).astype(np.float32)
    B[:k_half, n_half:n_half + n] = (-np.sin(ang)).astype(np.float32)

    # Pre-block so each (tk, tn) tile is a single contiguous HBM run.
    Bb = np.ascontiguousarray(B.reshape(k_pad, num_j, tn).transpose(1, 0, 2))

    # TODO(synk): for very large N, replace this O(N^2/2) dense folded basis
    # with a 4-step Cooley-Tukey factorization (batched matmuls + twiddles).
    meta = dict(n=n, k_half=k_half, k_pad=k_pad, tk=tk, num_k=num_k,
                n_half=n_half, cols_pad=cols_pad, tn=tn, num_j=num_j)
    return jnp.asarray(Bb), meta


def cusignal_fft(x):
    """Forward pass of CusignalFFT: (real(rfft(x)), imag(rfft(x))),
    each shaped (n, 1) with n = len(x)//2 + 1 (asserted even)."""
    N = x.shape[0]
    n = N // 2 + 1
    assert n % 2 == 0, "Toy fft only defined for even inputs!"

    basis, m = _rfft_folded_basis(N)
    k_half, k_pad, tk, num_k = m["k_half"], m["k_pad"], m["tk"], m["num_k"]
    n_half, cols_pad, tn, num_j = m["n_half"], m["cols_pad"], m["tn"], m["num_j"]

    # Real-input symmetry fold: O(N) prep that halves the contraction length.
    xf = x.astype(jnp.float32)
    idx = jnp.arange(k_half)
    rev = (N - idx) % N
    head = xf[:k_half]
    tail = xf[rev]
    self_paired = idx == rev                         # j = 0 and (N even) j = N/2
    y_e = jnp.where(self_paired, head, head + tail)  # drives the cos columns
    y_o = jnp.where(self_paired, 0.0, head - tail)   # drives the -sin columns

    # Pack into (num_k, 8, tk): row 0 = even fold, row 1 = odd fold.
    x_pad = jnp.zeros((_SUBLANES, k_pad), jnp.float32)
    x_pad = x_pad.at[0, :k_half].set(y_e)
    x_pad = x_pad.at[1, :k_half].set(y_o)
    x_blk = x_pad.reshape(_SUBLANES, num_k, tk).transpose(1, 0, 2)

    # VMEM footprint: double-buffered basis tile + resident signal + output.
    vmem_bytes = (2 * tk * tn * 4
                  + 2 * num_k * _SUBLANES * tk * 4
                  + 2 * _SUBLANES * tn * 4
                  + (2 << 20))
    vmem_limit = int(min(max(vmem_bytes, 16 << 20), 48 << 20))

    out = pl.pallas_call(
        dft_rfft_kernel,
        out_shape=jax.ShapeDtypeStruct((_SUBLANES, cols_pad), jnp.float32),
        grid_spec=pltpu.PrefetchScalarGridSpec(
            num_scalar_prefetch=0,
            grid=(num_j, num_k),
            in_specs=[
                # Whole folded signal: constant index map -> DMA'd once,
                # resident in VMEM for the entire grid.
                pl.BlockSpec((num_k, _SUBLANES, tk), lambda jb, kb: (0, 0, 0)),
                # Contiguous, pre-blocked basis tile.
                pl.BlockSpec((None, tk, tn), lambda jb, kb: (jb, kb, 0)),
            ],
            out_specs=pl.BlockSpec((_SUBLANES, tn), lambda jb, kb: (0, jb)),
        ),
        compiler_params=pltpu.CompilerParams(
            dimension_semantics=("parallel", "arbitrary"),
            vmem_limit_bytes=vmem_limit,
        ),
    )(x_blk, basis)

    # Row 0 carries the cos (real) columns, row 1 the -sin (imag) columns.
    out_r = out[0, :n].reshape(n, 1)
    out_i = out[1, n_half:n_half + n].reshape(n, 1)
    return out_r, out_i


if __name__ == "__main__":
    # N must satisfy (N//2 + 1) even, e.g. N = 30 -> n = 16.
    N = 30
    key = jax.random.PRNGKey(0)
    x = jax.random.normal(key, (N,), dtype=jnp.float32)

    out_r, out_i = cusignal_fft(x)
    out_r = jax.block_until_ready(out_r)
    out_i = jax.block_until_ready(out_i)

    # Sanity check against the reference rfft.
    ref = np.fft.rfft(np.asarray(x))
    ref_r = np.real(ref).reshape(-1, 1).astype(np.float32)
    ref_i = np.imag(ref).reshape(-1, 1).astype(np.float32)
    np.testing.assert_allclose(np.asarray(out_r), ref_r, rtol=1e-4, atol=1e-4)
    np.testing.assert_allclose(np.asarray(out_i), ref_i, rtol=1e-4, atol=1e-4)

    print("KERNEL_OK")
</pallas_src>

<mosaic_0001>
module attributes {stable_mosaic.version = 11 : i64} {
  func.func @dft_rfft_kernel(%arg0: i32, %arg1: i32, %arg2: memref<1x8x128xf32, #tpu.memory_space<vmem>>, %arg3: memref<1x128x256xf32, #tpu.memory_space<vmem>>, %arg4: memref<8x256xf32, #tpu.memory_space<vmem>>) attributes {dimension_semantics = [#tpu.dimension_semantics<parallel>, #tpu.dimension_semantics<arbitrary>], iteration_bounds = array<i64: 1, 1>, scalar_prefetch = 0 : i64, scratch_operands = 0 : i64, tpu.core_type = #tpu.core_type<tc>, window_params = [{pipeline_mode = #tpu.pipeline_mode<synchronous>, transform_indices = @transform_0, window_bounds = array<i64: 1, 8, 128>}, {transform_indices = @transform_1, window_bounds = array<i64: 1, 128, 256>}, {transform_indices = @transform_2, window_bounds = array<i64: 8, 256>}]} {
    %c0_i32 = arith.constant 0 : i32
    %0 = arith.cmpi eq, %arg1, %c0_i32 : i32
    %1 = arith.extui %0 : i1 to i32
    %c0_i32_0 = arith.constant 0 : i32
    %2 = arith.cmpi ne, %1, %c0_i32_0 : i32
    scf.if %2 {
      %cst_9 = arith.constant 0.000000e+00 : f32
      %12 = vector.broadcast %cst_9 : f32 to vector<8x256xf32>
      %c0_10 = arith.constant 0 : index
      %c0_11 = arith.constant 0 : index
      %13 = vector.load %arg4[%c0_10, %c0_11] : memref<8x256xf32, #tpu.memory_space<vmem>>, vector<8x256xf32>
      tpu.vector_store %arg4[%c0_10, %c0_11], %12 {strides = array<i32>} : memref<8x256xf32, #tpu.memory_space<vmem>>, vector<8x256xf32>,
    } else {
    }
    %c0 = arith.constant 0 : index
    %c0_1 = arith.constant 0 : index
    %3 = vector.load %arg4[%c0, %c0_1] : memref<8x256xf32, #tpu.memory_space<vmem>>, vector<8x256xf32>
    %4 = arith.index_cast %arg1 : i32 to index
    %c0_2 = arith.constant 0 : index
    %c0_3 = arith.constant 0 : index
    %5 = vector.load %arg2[%4, %c0_2, %c0_3] : memref<1x8x128xf32, #tpu.memory_space<vmem>>, vector<1x8x128xf32>
    %6 = vector.shape_cast %5 : vector<1x8x128xf32> to vector<8x128xf32>
    %c0_4 = arith.constant 0 : index
    %c0_5 = arith.constant 0 : index
    %c0_6 = arith.constant 0 : index
    %7 = vector.load %arg3[%c0_4, %c0_5, %c0_6] : memref<1x128x256xf32, #tpu.memory_space<vmem>>, vector<1x128x256xf32>
    %8 = vector.shape_cast %7 : vector<1x128x256xf32> to vector<128x256xf32>
    %cst = arith.constant dense<0.000000e+00> : vector<8x256xf32>
    %9 = tpu.matmul %6, %8, %cst {dimension_numbers = #tpu.dot_dimension_numbers<[1], [0], [0], [1], [0, 0, 1, 1], [], []>} : vector<8x128xf32>, vector<128x256xf32>, vector<8x256xf32> -> vector<8x256xf32>
    %10 = arith.addf %3, %9 : vector<8x256xf32>
    %c0_7 = arith.constant 0 : index
    %c0_8 = arith.constant 0 : index
    %11 = vector.load %arg4[%c0_7, %c0_8] : memref<8x256xf32, #tpu.memory_space<vmem>>, vector<8x256xf32>
    tpu.vector_store %arg4[%c0_7, %c0_8], %10 {strides = array<i32>} : memref<8x256xf32, #tpu.memory_space<vmem>>, vector<8x256xf32>,
    return
  }
  func.func @transform_0(%arg0: i32, %arg1: i32) -> (i32, i32, i32) {
    %c0_i32 = arith.constant 0 : i32
    %c0_i32_0 = arith.constant 0 : i32
    %c0_i32_1 = arith.constant 0 : i32
    %c0_i32_2 = arith.constant 0 : i32
    return %c0_i32, %c0_i32_0, %c0_i32_1 : i32, i32, i32
  }
  func.func @transform_1(%arg0: i32, %arg1: i32) -> (i32, i32, i32) {
    %c0_i32 = arith.constant 0 : i32
    %c0_i32_0 = arith.constant 0 : i32
    return %arg0, %arg1, %c0_i32 : i32, i32, i32
  }
  func.func @transform_2(%arg0: i32, %arg1: i32) -> (i32, i32) {
    %c0_i32 = arith.constant 0 : i32
    %c0_i32_0 = arith.constant 0 : i32
    return %c0_i32, %arg0 : i32, i32
  }
}

</mosaic_0001>

<llo_original>
// kernel: tpu_custom_call.1
$region0: #{tpu_custom_call.1}
  #allocation0 [shape = 'u32[]', space=smem, size = 0x4, offset = 0x4, fixed_abs, tag = 'smem constant byte address 0x4 - core index']
  #allocation1 [shape = 'u32[144,128]{1,0:T(1,128)}', space=vmem, size = 0x12000, scoped, tag = 'internal scratch']
  %s0 = inlined_call_operand.hbm [shape: f32[1,8,128], index: 0, kind: input, shape index: {}]
  %s1 = inlined_call_operand.hbm [shape: f32[1,128,256], index: 1, kind: input, shape index: {}]
  %s2 = inlined_call_operand.hbm [shape: f32[8,256], index: 2, kind: output, shape index: {}]
  %s3 = sld [smem:[#allocation0]]
  $region30: #{tpu_custom_call.1} parent=0
    _
  %s5 = ssub.s32 1, %s3
  %s6 = scalar_select 0, %s5, %s3
  $region1: #{tpu_custom_call.1} parent=0
    #allocation2 [shape = 'u8[4096]{0}', space=vmem, size = 0x1000, scoped, tag = 'input window, operand 0, single buffered']
    #allocation3 [shape = 's32[1]{0}', space=sflag, size = 0x4, scoped, tag = 'scoped memory for tpu_custom_call.1']
    #allocation4 [shape = 's32[1]{0}', space=sflag, size = 0x4, scoped, tag = 'scoped memory for tpu_custom_call.1']
    #allocation5 [shape = 'u8[131072]{0}', space=vmem, size = 0x20000, scoped, tag = 'input window, operand 1, single buffered']
    #allocation6 [shape = 's32[1]{0}', space=sflag, size = 0x4, scoped, tag = 'scoped memory for tpu_custom_call.1']
    #allocation7 [shape = 'u8[8192]{0}', space=vmem, size = 0x2000, scoped, tag = 'output window, operand 0, single buffered']
    %7 = vsyncpa [#allocation3], 0
    %8 = vsyncpa [#allocation6], 0
    %9 = vsyncpa [#allocation4], 0
    // Predicated region
    $region2: #{tpu_custom_call.1} parent=1 // pred_check
      _
    $region3: #{tpu_custom_call.1} parent=1 // pred_check_branch
      %11 = sbr.rel (0) target = $region5
    $region4: #{tpu_custom_call.1} parent=1 // pred_region
      %s13 = ssub.s32 128, 128
      %14 = vsyncadd [#allocation3], %s13
      %s16 = sshll.u32 [#allocation2], 4
      %s17 = int_to_ptr.vmem [resolvable:$true] %s16
      %19 = dma.hbm_to_vmem [thread:$0]  %s0, 128, %s17, [#allocation3]
    $region5: #{tpu_custom_call.1} parent=1 // pred_fallthru
      _
    // Predicated region
    $region6: #{tpu_custom_call.1} parent=1 // pred_check
      _
    $region7: #{tpu_custom_call.1} parent=1 // pred_check_branch
      %21 = sbr.rel (0) target = $region9
    $region8: #{tpu_custom_call.1} parent=1 // pred_region
      %s23 = ssub.s32 4096, 4096
      %24 = vsyncadd [#allocation6], %s23
      %s25 = sshll.u32 [#allocation5], 4
      %s26 = int_to_ptr.vmem [resolvable:$true] %s25
      %31 = dma.hbm_to_vmem [thread:$0]  %s1, 4096, %s26, [#allocation6], 256, 256, 16
    $region9: #{tpu_custom_call.1} parent=1 // pred_fallthru
      _
    // Predicated region
    $region10: #{tpu_custom_call.1} parent=1 // pred_check
      _
    $region11: #{tpu_custom_call.1} parent=1 // pred_check_branch
      %33 = sbr.rel (0) target = $region13
    $region12: #{tpu_custom_call.1} parent=1 // pred_region
      %34 = dma.done [#allocation3], 128
    $region13: #{tpu_custom_call.1} parent=1 // pred_fallthru
      _
    // Predicated region
    $region14: #{tpu_custom_call.1} parent=1 // pred_check
      _
    $region15: #{tpu_custom_call.1} parent=1 // pred_check_branch
      %36 = sbr.rel (0) target = $region17
    $region16: #{tpu_custom_call.1} parent=1 // pred_region
      %37 = dma.done [#allocation6], 4096
    $region17: #{tpu_custom_call.1} parent=1 // pred_fallthru
      _
    %p38 = scmp.eq.s32.totalorder 0, 0
    // Predicated region
    $region18: #{tpu_custom_call.1} parent=1 // pred_check
      %p39 = pneg %p38
    $region19: #{tpu_custom_call.1} parent=1 // pred_check_branch
      %41 = sbr.rel (%p39) target = $region21
    $region20: #{tpu_custom_call.1} parent=1 // pred_region
      %42 = vst [vmem:[#allocation7] sm:$0xff] 0.0
      %43 = vst [vmem:[#allocation7 + $0x8] sm:$0xff] 0.0
    $region21: #{tpu_custom_call.1} parent=1 // pred_fallthru
      _
    %v44 = vld [vmem:[#allocation7] sm:$0xff]
    %v45 = vld [vmem:[#allocation7 + $0x8] sm:$0xff]
    %s46 = smul.u32 0, 8
    %s47 = scalar_lea.vmem [#allocation2], %s46
    %v48 = vld [vmem:[%s47] sm:$0xff]
    %v49 = vld [vmem:[#allocation5] sm:$0xff]
    %v50 = vld [vmem:[#allocation5 + $0x8] sm:$0xff]
    %v51 = vld [vmem:[#allocation5 + $0x10] sm:$0xff]
    %v52 = vld [vmem:[#allocation5 + $0x18] sm:$0xff]
    %v53 = vld [vmem:[#allocation5 + $0x20] sm:$0xff]
    %v54 = vld [vmem:[#allocation5 + $0x28] sm:$0xff]
    %v55 = vld [vmem:[#allocation5 + $0x30] sm:$0xff]
    %v56 = vld [vmem:[#allocation5 + $0x38] sm:$0xff]
    %v57 = vld [vmem:[#allocation5 + $0x40] sm:$0xff]
    %v58 = vld [vmem:[#allocation5 + $0x48] sm:$0xff]
    %v59 = vld [vmem:[#allocation5 + $0x50] sm:$0xff]
    %v60 = vld [vmem:[#allocation5 + $0x58] sm:$0xff]
    %v61 = vld [vmem:[#allocation5 + $0x60] sm:$0xff]
    %v62 = vld [vmem:[#allocation5 + $0x68] sm:$0xff]
    %v63 = vld [vmem:[#allocation5 + $0x70] sm:$0xff]
    %v64 = vld [vmem:[#allocation5 + $0x78] sm:$0xff]
    %v65 = vld [vmem:[#allocation5 + $0x80] sm:$0xff]
    %v66 = vld [vmem:[#allocation5 + $0x88] sm:$0xff]
    %v67 = vld [vmem:[#allocation5 + $0x90] sm:$0xff]
    %v68 = vld [vmem:[#allocation5 + $0x98] sm:$0xff]
    %v69 = vld [vmem:[#allocation5 + $0xa0] sm:$0xff]
    %v70 = vld [vmem:[#allocation5 + $0xa8] sm:$0xff]
    %v71 = vld [vmem:[#allocation5 + $0xb0] sm:$0xff]
    %v72 = vld [vmem:[#allocation5 + $0xb8] sm:$0xff]
    %v73 = vld [vmem:[#allocation5 + $0xc0] sm:$0xff]
    %v74 = vld [vmem:[#allocation5 + $0xc8] sm:$0xff]
    %v75 = vld [vmem:[#allocation5 + $0xd0] sm:$0xff]
    %v76 = vld [vmem:[#allocation5 + $0xd8] sm:$0xff]
    %v77 = vld [vmem:[#allocation5 + $0xe0] sm:$0xff]
    %v78 = vld [vmem:[#allocation5 + $0xe8] sm:$0xff]
    %v79 = vld [vmem:[#allocation5 + $0xf0] sm:$0xff]
    %v80 = vld [vmem:[#allocation5 + $0xf8] sm:$0xff]
    %81 = vmatprep.subr.mxu0 %v50
    %82 = vmatpush1.msra.mxu0 %v49
    %83 = vmatprep.subr.mxu0 %v52
    %84 = vmatpush1.msra.mxu0 %v51
    %85 = vmatprep.subr.mxu0 %v54
    %86 = vmatpush1.msra.mxu0 %v53
    %87 = vmatprep.subr.mxu0 %v56
    %88 = vmatpush1.msra.mxu0 %v55
    %89 = vmatprep.subr.mxu0 %v58
    %90 = vmatpush1.msra.mxu0 %v57
    %91 = vmatprep.subr.mxu0 %v60
    %92 = vmatpush1.msra.mxu0 %v59
    %93 = vmatprep.subr.mxu0 %v62
    %94 = vmatpush1.msra.mxu0 %v61
    %95 = vmatprep.subr.mxu0 %v64
    %96 = vmatpush1.msra.mxu0 %v63
    %97 = vmatprep.subr.mxu0 %v66
    %98 = vmatpush1.msra.mxu0 %v65
    %99 = vmatprep.subr.mxu0 %v68
    %100 = vmatpush1.msra.mxu0 %v67
    %101 = vmatprep.subr.mxu0 %v70
    %102 = vmatpush1.msra.mxu0 %v69
    %103 = vmatprep.subr.mxu0 %v72
    %104 = vmatpush1.msra.mxu0 %v71
    %105 = vmatprep.subr.mxu0 %v74
    %106 = vmatpush1.msra.mxu0 %v73
    %107 = vmatprep.subr.mxu0 %v76
    %108 = vmatpush1.msra.mxu0 %v75
    %109 = vmatprep.subr.mxu0 %v78
    %110 = vmatpush1.msra.mxu0 %v77
    %111 = vmatprep.subr.mxu0 %v80
    %112 = vmatpush1.msra.mxu0 %v79
    %113 = vmatprep.subr.mxu0 0.0
    %114 = vmatpush1.msra.mxu0 0.0
    %115 = vmatprep.subr.mxu0 0.0
    %116 = vmatpush1.msra.mxu0 0.0
    %117 = vmatprep.subr.mxu0 0.0
    %118 = vmatpush1.msra.mxu0 0.0
    %119 = vmatprep.subr.mxu0 0.0
    %120 = vmatpush1.msra.mxu0 0.0
    %121 = vmatprep.subr.mxu0 0.0
    %122 = vmatpush1.msra.mxu0 0.0
    %123 = vmatprep.subr.mxu0 0.0
    %124 = vmatpush1.msra.mxu0 0.0
    %125 = vmatprep.subr.mxu0 0.0
    %126 = vmatpush1.msra.mxu0 0.0
    %127 = vmatprep.subr.mxu0 0.0
    %128 = vmatpush1.msra.mxu0 0.0
    %129 = vmatprep.subr.mxu0 0.0
    %130 = vmatpush1.msra.mxu0 0.0
    %131 = vmatprep.subr.mxu0 0.0
    %132 = vmatpush1.msra.mxu0 0.0
    %133 = vmatprep.subr.mxu0 0.0
    %134 = vmatpush1.msra.mxu0 0.0
    %135 = vmatprep.subr.mxu0 0.0
    %136 = vmatpush1.msra.mxu0 0.0
    %137 = vmatprep.subr.mxu0 0.0
    %138 = vmatpush1.msra.mxu0 0.0
    %139 = vmatprep.subr.mxu0 0.0
    %140 = vmatpush1.msra.mxu0 0.0
    %141 = vmatprep.subr.mxu0 0.0
    %142 = vmatpush1.msra.mxu0 0.0
    %143 = vmatprep.subr.mxu0 0.0
    %144 = vmatpush1.msra.mxu0 0.0
    %145 = vmatprep.mubr.f32.mxu0 0.0
    %146 = vmatmul.mubr.f32.gmra.mrb[0].mxu0 %v48
    %v147 = vpop.f32.mrb[0].mxu0
    %v148 = vadd.f32 0.0, %v147
    %v149 = vpop.f32.mrb[0].mxu0
    %v150 = vadd.f32 0.0, %v149
    %151 = vdwg.mxu0
    %v152 = vadd.f32 %v44, %v148
    %v153 = vadd.f32 %v45, %v150
    %154 = vst [vmem:[#allocation7] sm:$0xff] %v152
    %155 = vst [vmem:[#allocation7 + $0x8] sm:$0xff] %v153
    // Predicated region
    $region22: #{tpu_custom_call.1} parent=1 // pred_check
      _
    $region23: #{tpu_custom_call.1} parent=1 // pred_check_branch
      %157 = sbr.rel (0) target = $region25
    $region24: #{tpu_custom_call.1} parent=1 // pred_region
      %s159 = ssub.s32 256, 256
      %160 = vsyncadd [#allocation4], %s159
      %s162 = sshll.u32 [#allocation7], 4
      %s163 = int_to_ptr.vmem [resolvable:$true] %s162
      %165 = dma.vmem_to_hbm [thread:$0]  %s163, 256, %s2, [#allocation4]
    $region25: #{tpu_custom_call.1} parent=1 // pred_fallthru
      _
    // Predicated region
    $region26: #{tpu_custom_call.1} parent=1 // pred_check
      _
    $region27: #{tpu_custom_call.1} parent=1 // pred_check_branch
      %167 = sbr.rel (0) target = $region29
    $region28: #{tpu_custom_call.1} parent=1 // pred_region
      %168 = dma.done [#allocation4], 256
    $region29: #{tpu_custom_call.1} parent=1 // pred_fallthru
      _
    %169 = vsyncpa [#allocation3], 1
    %170 = vsyncpa [#allocation6], 1
    %171 = vsyncpa [#allocation4], 1

</llo_original>
